<compile_context>
chip_gen: v5e
topology: v5e:2x2
jax: 0.10.0
libtpu: 0.0.40
codegen_flags: <defaults>
</compile_context>

<pallas_src>
import functools

import jax
import jax.numpy as jnp
from jax.experimental import pallas as pl
from jax.experimental.pallas import tpu as pltpu


def _round_up(x, m):
    return (x + m - 1) // m * m


def _pow_int_or_float(x, gamma):
    """x**gamma. Integer gammas are unrolled as VPU multiplies (no EUP pow).

    x must already be clamped >= 0 for the non-integer path."""
    g = float(gamma)
    if g == 0.0:
        return jnp.ones_like(x)
    if g.is_integer() and 0.0 < g <= 8.0:
        r = x
        for _ in range(int(g) - 1):
            r = r * x
        return r
    return jnp.power(x, g)


def _focal_loss_kernel(logits_ref, target_ref, out_ref, *, alpha, gamma,
                       reduction, n_valid):
    i = pl.program_id(0)
    logits = logits_ref[...].astype(jnp.float32)            # (TILE_N, C)
    tgt = target_ref[...]                                    # (TILE_N, 1) int32
    tn, c = logits.shape

    # Row-validity mask for the (possibly padded) last tile.
    row = i * tn + jax.lax.broadcasted_iota(jnp.int32, (tn, 1), 0)
    valid = (row < n_valid).astype(jnp.float32)              # (TILE_N, 1)

    # One-hot "gather" of the target logit (no dynamic lane gather on TPU).
    col = jax.lax.broadcasted_iota(jnp.int32, (tn, c), 1)
    onehot = (col == tgt).astype(jnp.float32)                # (TILE_N, C)

    # Numerically stable cross-entropy: ce = logsumexp(x) - x[target].
    m = jnp.max(logits, axis=-1, keepdims=True)              # (TILE_N, 1)
    s = logits - m
    sumexp = jnp.sum(jnp.exp(s), axis=-1, keepdims=True)
    tgt_s = jnp.sum(s * onehot, axis=-1, keepdims=True)      # x[target] - m
    ce = jnp.log(sumexp) - tgt_s                              # (TILE_N, 1) >= 0

    pt = jnp.exp(-ce)
    omp = jnp.maximum(1.0 - pt, 0.0)                          # clamp rounding
    focal = alpha * _pow_int_or_float(omp, gamma) * ce * valid

    if reduction in ("mean", "sum"):
        partial = jnp.sum(focal)                              # padded rows are 0
        # Lane-dense (8,128) slab per tile; wrapper reads [i, 0, 0].
        out_ref[...] = jnp.broadcast_to(partial, out_ref.shape)
    else:
        out_ref[...] = focal


def focal_loss(logits, targets, *, alpha=1.0, gamma=2.0, reduction="mean",
               tile_n=None):
    """JAX/Pallas equivalent of FocalLoss.forward(input, target).

    logits:  float array [N, C] (f32 or bf16 -- bf16 halves HBM traffic)
    targets: int array  [N]     (class indices)
    """
    N, C = logits.shape
    itemsize = jnp.dtype(logits.dtype).itemsize
    granule = max(8, 32 // itemsize)          # sublane granularity per dtype

    if tile_n is None:
        # ~4 MiB per logits tile => 2 double-buffered inputs stay well under the
        # scoped VMEM limit on every generation (incl. v7x's 64 MiB physical).
        tile_n = (4 * 1024 * 1024) // max(1, C * itemsize)
        tile_n = min(1024, tile_n)
    tile_n = max(granule, min(int(tile_n), _round_up(N, granule)))
    tile_n = _round_up(tile_n, granule)

    num_tiles = int(pl.cdiv(N, tile_n))
    n_pad = num_tiles * tile_n

    tgt2d = targets.astype(jnp.int32).reshape(N, 1)
    if n_pad != N:
        logits = jnp.pad(logits, ((0, n_pad - N), (0, 0)))
        tgt2d = jnp.pad(tgt2d, ((0, n_pad - N), (0, 0)))

    kernel = functools.partial(
        _focal_loss_kernel, alpha=float(alpha), gamma=float(gamma),
        reduction=reduction, n_valid=N)

    in_specs = [
        pl.BlockSpec((tile_n, C), lambda i: (i, 0)),   # logits tile (native dtype)
        pl.BlockSpec((tile_n, 1), lambda i: (i, 0)),   # target indices
    ]

    if reduction in ("mean", "sum"):
        # One partial sum per tile, stored lane-dense; final reduce in JAX.
        out_shape = jax.ShapeDtypeStruct((num_tiles, 8, 128), jnp.float32)
        out_specs = pl.BlockSpec((1, 8, 128), lambda i: (i, 0, 0))
        out_bytes = num_tiles * 8 * 128 * 4
    else:
        # Per-sample output.  Output bytes are ~1/C of the logits read, so this
        # store path is not on the critical path of the HBM-bound kernel.
        out_shape = jax.ShapeDtypeStruct((n_pad, 1), jnp.float32)
        out_specs = pl.BlockSpec((tile_n, 1), lambda i: (i, 0))
        out_bytes = n_pad * 4

    cost = pl.CostEstimate(
        flops=6 * N * C,
        transcendentals=N * C + 3 * N,
        bytes_accessed=n_pad * C * itemsize + n_pad * 4 + out_bytes)

    out = pl.pallas_call(
        kernel,
        grid=(num_tiles,),
        out_shape=out_shape,
        in_specs=in_specs,
        out_specs=out_specs,
        compiler_params=pltpu.CompilerParams(
            dimension_semantics=("parallel",),
            vmem_limit_bytes=32 * 1024 * 1024),
        cost_estimate=cost,
    )(logits, tgt2d)

    if reduction == "mean":
        return out[:, 0, 0].sum() / jnp.float32(N)
    if reduction == "sum":
        return out[:, 0, 0].sum()
    return out[:N, 0]


def _reference_focal_loss(logits, targets, alpha=1.0, gamma=2.0,
                          reduction="mean"):
    """Pure-JAX reference mirroring the PyTorch module."""
    logp = jax.nn.log_softmax(logits.astype(jnp.float32), axis=-1)
    ce = -jnp.take_along_axis(logp, targets[:, None].astype(jnp.int32),
                              axis=-1)[:, 0]
    pt = jnp.exp(-ce)
    fl = alpha * (1.0 - pt) ** gamma * ce
    if reduction == "mean":
        return fl.mean()
    if reduction == "sum":
        return fl.sum()
    return fl


if __name__ == "__main__":
    key = jax.random.PRNGKey(0)
    k1, k2, k3, k4 = jax.random.split(key, 4)

    # Primary example: small batch of logits over 32 classes, 'mean' reduction.
    N, C = 8, 32
    logits = jax.random.normal(k1, (N, C), dtype=jnp.float32)
    targets = jax.random.randint(k2, (N,), 0, C, dtype=jnp.int32)

    loss = focal_loss(logits, targets, alpha=1.0, gamma=2.0, reduction="mean")
    loss = jax.block_until_ready(loss)
    ref = _reference_focal_loss(logits, targets, 1.0, 2.0, "mean")
    assert jnp.allclose(loss, ref, rtol=1e-5, atol=1e-5), (loss, ref)

    # Multi-tile + padded-tail path (N not a multiple of tile_n), all reductions.
    N2, C2 = 20, 48
    logits2 = jax.random.normal(k3, (N2, C2), dtype=jnp.float32)
    targets2 = jax.random.randint(k4, (N2,), 0, C2, dtype=jnp.int32)
    for red in ("mean", "sum", "none"):
        got = jax.block_until_ready(
            focal_loss(logits2, targets2, alpha=0.5, gamma=2.0, reduction=red,
                       tile_n=8))
        want = _reference_focal_loss(logits2, targets2, 0.5, 2.0, red)
        assert jnp.allclose(got, want, rtol=1e-5, atol=1e-5), (red, got, want)

    # bf16 logits pass-through (halved HBM read traffic), upcast in-kernel.
    logits_bf16 = logits2.astype(jnp.bfloat16)
    got = jax.block_until_ready(
        focal_loss(logits_bf16, targets2, alpha=1.0, gamma=2.0,
                   reduction="mean", tile_n=8))
    want = _reference_focal_loss(logits_bf16.astype(jnp.float32), targets2,
                                 1.0, 2.0, "mean")
    assert jnp.allclose(got, want, rtol=1e-4, atol=1e-5), (got, want)

    print("KERNEL_OK")
</pallas_src>

<mosaic_0001>
module attributes {stable_mosaic.version = 11 : i64} {
  func.func @_focal_loss_kernel(%arg0: i32, %arg1: memref<8x32xf32, #tpu.memory_space<vmem>>, %arg2: memref<8x1xi32, #tpu.memory_space<vmem>>, %arg3: memref<1x8x128xf32, #tpu.memory_space<vmem>>) attributes {dimension_semantics = [#tpu.dimension_semantics<parallel>], iteration_bounds = array<i64: 1>, scalar_prefetch = 0 : i64, scratch_operands = 0 : i64, tpu.core_type = #tpu.core_type<tc>, window_params = [{transform_indices = @transform_0, window_bounds = array<i64: 8, 32>}, {transform_indices = @transform_1, window_bounds = array<i64: 8, 1>}, {transform_indices = @transform_2, window_bounds = array<i64: 1, 8, 128>}]} {
    %c0 = arith.constant 0 : index
    %c0_0 = arith.constant 0 : index
    %0 = vector.load %arg1[%c0, %c0_0] : memref<8x32xf32, #tpu.memory_space<vmem>>, vector<8x32xf32>
    %c0_1 = arith.constant 0 : index
    %c0_2 = arith.constant 0 : index
    %1 = vector.load %arg2[%c0_1, %c0_2] : memref<8x1xi32, #tpu.memory_space<vmem>>, vector<8x1xi32>
    %c8_i32 = arith.constant 8 : i32
    %2 = arith.muli %arg0, %c8_i32 : i32
    %3 = tpu.iota {dimensions = array<i32: 0>} : vector<8x1xi32>
    %4 = vector.broadcast %2 : i32 to vector<8x1xi32>
    %5 = arith.addi %4, %3 : vector<8x1xi32>
    %c8_i32_3 = arith.constant 8 : i32
    %6 = vector.broadcast %c8_i32_3 : i32 to vector<8x1xi32>
    %7 = arith.cmpi slt, %5, %6 : vector<8x1xi32>
    %8 = arith.extui %7 : vector<8x1xi1> to vector<8x1xi32>
    %9 = arith.sitofp %8 : vector<8x1xi32> to vector<8x1xf32>
    %10 = tpu.iota {dimensions = array<i32: 1>} : vector<8x32xi32>
    %11 = vector.broadcast %1 : vector<8x1xi32> to vector<8x32xi32>
    %12 = arith.cmpi eq, %10, %11 : vector<8x32xi32>
    %13 = arith.extui %12 : vector<8x32xi1> to vector<8x32xi32>
    %14 = arith.sitofp %13 : vector<8x32xi32> to vector<8x32xf32>
    %cst = arith.constant dense<0xFF800000> : vector<8xf32>
    %15 = vector.multi_reduction <maximumf>, %0, %cst [1] : vector<8x32xf32> to vector<8xf32>
    %16 = vector.shape_cast %15 : vector<8xf32> to vector<8x1xf32>
    %17 = vector.broadcast %16 : vector<8x1xf32> to vector<8x32xf32>
    %18 = arith.subf %0, %17 : vector<8x32xf32>
    %19 = math.exp %18 : vector<8x32xf32>
    %cst_4 = arith.constant dense<0.000000e+00> : vector<8xf32>
    %20 = vector.multi_reduction <add>, %19, %cst_4 [1] : vector<8x32xf32> to vector<8xf32>
    %21 = vector.shape_cast %20 : vector<8xf32> to vector<8x1xf32>
    %22 = arith.mulf %18, %14 : vector<8x32xf32>
    %cst_5 = arith.constant dense<0.000000e+00> : vector<8xf32>
    %23 = vector.multi_reduction <add>, %22, %cst_5 [1] : vector<8x32xf32> to vector<8xf32>
    %24 = vector.shape_cast %23 : vector<8xf32> to vector<8x1xf32>
    %25 = math.log %21 : vector<8x1xf32>
    %26 = arith.subf %25, %24 : vector<8x1xf32>
    %cst_6 = arith.constant 0.000000e+00 : f32
    %27 = vector.broadcast %cst_6 : f32 to vector<8x1xf32>
    %28 = arith.subf %27, %26 : vector<8x1xf32>
    %29 = math.exp %28 : vector<8x1xf32>
    %cst_7 = arith.constant 1.000000e+00 : f32
    %30 = vector.broadcast %cst_7 : f32 to vector<8x1xf32>
    %31 = arith.subf %30, %29 : vector<8x1xf32>
    %cst_8 = arith.constant 0.000000e+00 : f32
    %32 = vector.broadcast %cst_8 : f32 to vector<8x1xf32>
    %33 = arith.maximumf %31, %32 : vector<8x1xf32>
    %34 = arith.mulf %33, %33 : vector<8x1xf32>
    %cst_9 = arith.constant 1.000000e+00 : f32
    %35 = vector.broadcast %cst_9 : f32 to vector<8x1xf32>
    %36 = arith.mulf %35, %34 : vector<8x1xf32>
    %37 = arith.mulf %36, %26 : vector<8x1xf32>
    %38 = arith.mulf %37, %9 : vector<8x1xf32>
    %39 = vector.shape_cast %38 : vector<8x1xf32> to vector<1x8x1xf32>
    %cst_10 = arith.constant dense<0.000000e+00> : vector<1xf32>
    %40 = vector.multi_reduction <add>, %39, %cst_10 [1, 2] : vector<1x8x1xf32> to vector<1xf32>
    %41 = vector.shape_cast %40 : vector<1xf32> to vector<1x1x1xf32>
    %42 = vector.extract %41[0, 0, 0] : f32 from vector<1x1x1xf32>
    %43 = vector.broadcast %42 : f32 to vector<1x8x128xf32>
    %c0_11 = arith.constant 0 : index
    %c0_12 = arith.constant 0 : index
    %c0_13 = arith.constant 0 : index
    %44 = vector.load %arg3[%c0_11, %c0_12, %c0_13] : memref<1x8x128xf32, #tpu.memory_space<vmem>>, vector<1x8x128xf32>
    tpu.vector_store %arg3[%c0_11, %c0_12, %c0_13], %43 {strides = array<i32>} : memref<1x8x128xf32, #tpu.memory_space<vmem>>, vector<1x8x128xf32>,
    return
  }
  func.func @transform_0(%arg0: i32) -> (i32, i32) {
    %c0_i32 = arith.constant 0 : i32
    %c0_i32_0 = arith.constant 0 : i32
    return %arg0, %c0_i32 : i32, i32
  }
  func.func @transform_1(%arg0: i32) -> (i32, i32) {
    %c0_i32 = arith.constant 0 : i32
    %c0_i32_0 = arith.constant 0 : i32
    return %arg0, %c0_i32 : i32, i32
  }
  func.func @transform_2(%arg0: i32) -> (i32, i32, i32) {
    %c0_i32 = arith.constant 0 : i32
    %c0_i32_0 = arith.constant 0 : i32
    %c0_i32_1 = arith.constant 0 : i32
    return %arg0, %c0_i32, %c0_i32_0 : i32, i32, i32
  }
}

</mosaic_0001>

<llo_original>
// kernel: tpu_custom_call.1
$region0: #{tpu_custom_call.1}
  #allocation0 [shape = 'u32[]', space=smem, size = 0x4, offset = 0x4, fixed_abs, tag = 'smem constant byte address 0x4 - core index']
  #allocation1 [shape = 'u32[72,128]{1,0:T(1,128)}', space=vmem, size = 0x9000, scoped, tag = 'internal scratch']
  %s0 = inlined_call_operand.vmem [shape: f32[8,32], index: 0, kind: input, shape index: {}]
  %s1 = inlined_call_operand.vmem [shape: s32[8,1], index: 1, kind: input, shape index: {}]
  %s2 = inlined_call_operand.hbm [shape: f32[1,8,128], index: 2, kind: output, shape index: {}]
  %s3 = sld [smem:[#allocation0]]
  $region18: #{tpu_custom_call.1} parent=0
    _
  %s5 = ssub.s32 1, %s3
  %s6 = scalar_select 0, %s5, %s3
  $region1: #{tpu_custom_call.1} parent=0
    #allocation2 [shape = 'u8[4096]{0}', space=vmem, size = 0x1000, scoped, tag = 'output window, operand 0, single buffered']
    #allocation3 [shape = 's32[1]{0}', space=sflag, size = 0x4, scoped, tag = 'scoped memory for tpu_custom_call.1']
    %7 = vsyncpa [#allocation3], 0
    // Predicated region
    $region2: #{tpu_custom_call.1} parent=1 // pred_check
      _
    $region3: #{tpu_custom_call.1} parent=1 // pred_check_branch
      %9 = sbr.rel (0) target = $region5
    $region4: #{tpu_custom_call.1} parent=1 // pred_region
      _
    $region5: #{tpu_custom_call.1} parent=1 // pred_fallthru
      _
    // Predicated region
    $region6: #{tpu_custom_call.1} parent=1 // pred_check
      _
    $region7: #{tpu_custom_call.1} parent=1 // pred_check_branch
      %11 = sbr.rel (0) target = $region9
    $region8: #{tpu_custom_call.1} parent=1 // pred_region
      _
    $region9: #{tpu_custom_call.1} parent=1 // pred_fallthru
      _
    %v12 = vld [vmem:[%s0] sm:$0xff]
    %v13 = vld [vmem:[%s1] sm:$0xff]
    %s14 = smul.u32 0, 8
    %v15 = vlaneseq
    %v16 = vshrl.u32 %v15, 7
    %v17 = vstv %s14
    %v18 = vadd.s32 %v17, %v16
    %vm19 = vcmp.lt.s32.totalorder %v18, 8
    %v20 = vsel %vm19, 1, 0
    %v21 = vcvt.s32.f32 %v20
    %v22 = vlaneseq
    %v23 = vand.u32 %v22, 127
    %24 = vset.pattern.permute.xlu0 0
    %25 = vperm.xlu0 %24, %v13
    %v26 = vpop.permute.xlu0 %25
    %vm27 = vcmp.eq.s32.totalorder %v23, %v26
    %v28 = vsel %vm27, 1, 0
    %v29 = vcvt.s32.f32 %v28
    %vm30 = vcmask 261120
    %v31 = vsel %vm30, %v12, -inf
    %32 = vmax.xlane.f32.xlu0 %v31
    %v33 = vpop.xlane.xlu0 %32
    %v34 = vsub.f32 %v12, %v33
    %v35 = vmul.f32 %v34, 1.442695
    %v36 = vpow.pop %v35
    %v37 = vsel %vm30, %v36, 0.0
    %38 = vadd.xlane.f32.xlu0 %v37
    %v39 = vpop.xlane.xlu0 %38
    %v40 = vmul.f32 %v34, %v29
    %v41 = vsel %vm30, %v40, 0.0
    %42 = vadd.xlane.f32.xlu0 %v41
    %v43 = vpop.xlane.xlu0 %42
    %v44 = vlog2.pop %v39
    %v45 = vmul.f32 %v44, 0.6931472
    %v46 = vsub.f32 %v45, %v43
    %v47 = vsub.f32 0.0, %v46
    %v48 = vmul.f32 %v47, 1.442695
    %v49 = vpow.pop %v48
    %v50 = vsub.f32 1.0, %v49
    %v51 = vmax.f32 %v50, 0.0
    %v52 = vmul.f32 %v51, %v51
    %v53 = vmul.f32 %v52, %v46
    %v54 = vmul.f32 %v53, %v21
    %vm55 = vcmask 7168
    %v56 = vsel %vm55, %v54, 0.0
    %57 = vadd.xlane.f32.xlu0 %v56
    %v58 = vpop.xlane.xlu0 %57
    %v59 = vrot.slane %v58, 4
    %v60 = vadd.f32 %v58, %v59
    %v61 = vrot.slane %v60, 2
    %v62 = vadd.f32 %v60, %v61
    %v63 = vrot.slane %v62, 1
    %v64 = vadd.f32 %v62, %v63
    %s65 = vtos %v64
    %v66 = vstv %s65
    %67 = vst [vmem:[#allocation2] sm:$0xff] %v66
    // Predicated region
    $region10: #{tpu_custom_call.1} parent=1 // pred_check
      _
    $region11: #{tpu_custom_call.1} parent=1 // pred_check_branch
      %69 = sbr.rel (0) target = $region13
    $region12: #{tpu_custom_call.1} parent=1 // pred_region
      %71 = vsyncadd [#allocation3], 0
      %s73 = sshll.u32 [#allocation2], 4
      %s74 = int_to_ptr.vmem [resolvable:$true] %s73
      %s75 = sshll.u32 %s2, 4
      %s76 = int_to_ptr.hbm [resolvable:$true] %s75
      %78 = dma.vmem_to_hbm [thread:$0]  %s74, 128, %s76, [#allocation3]
    $region13: #{tpu_custom_call.1} parent=1 // pred_fallthru
      _
    // Predicated region
    $region14: #{tpu_custom_call.1} parent=1 // pred_check
      _
    $region15: #{tpu_custom_call.1} parent=1 // pred_check_branch
      %80 = sbr.rel (0) target = $region17
    $region16: #{tpu_custom_call.1} parent=1 // pred_region
      %82 = dma.done [#allocation3], 128
    $region17: #{tpu_custom_call.1} parent=1 // pred_fallthru
      _
    %83 = vsyncpa [#allocation3], 1

</llo_original>
